<compile_context>
chip_gen: v7x
topology: tpu7x:2x2x1
jax: 0.10.0
libtpu: 0.0.40
codegen_flags: <defaults>
</compile_context>

<pallas_src>
import functools
from typing import NamedTuple, Optional

import jax
import jax.numpy as jnp
from jax.experimental import pallas as pl
from jax.experimental.pallas import tpu as pltpu


# ---------------------------------------------------------------------------
# helpers
# ---------------------------------------------------------------------------
def _round_up(x, m):
    return -(-x // m) * m


def _pad_to(x, axis, target):
    pad = target - x.shape[axis]
    if pad == 0:
        return x
    pads = [(0, 0)] * x.ndim
    pads[axis] = (0, pad)
    return jnp.pad(x, pads)


_MOSAIC_SCRATCH_MARGIN = 2 * 1024 * 1024  # headroom for Mosaic internal scratch


def _vmem_budget():
    """~75% of this generation's per-core VMEM (96 MiB v5e/v6e, 48 MiB v7x)."""
    cap = 64 * 1024 * 1024  # conservative fallback == v7x per-TensorCore VMEM
    try:
        info = pltpu.get_tpu_info()
        cap = int(getattr(info, "vmem_capacity_bytes", cap))
    except Exception:
        pass
    return max((cap * 3) // 4, 32 * 1024 * 1024)


def _vmem_need(tm, tn, tk, in_item, out_item, with_acc):
    need = 2 * (tm * tk + tk * tn) * in_item   # double-buffered x / w tiles
    need += 2 * tn * 4                         # double-buffered f32 bias tile
    need += 2 * tm * tn * out_item             # double-buffered output tile
    if with_acc:
        need += tm * tn * 4                    # f32 accumulator scratch
    return need + _MOSAIC_SCRATCH_MARGIN


def _tile_candidates(full_128):
    caps = (2048, 1024, 512, 256, 128)
    cands = {min(full_128, c) for c in caps}
    if full_128 <= caps[0]:
        cands.add(full_128)
    return sorted(cands, reverse=True)


class _Plan(NamedTuple):
    C: int          # true class_size (for output slicing)
    E: int          # true embed_size
    Cp: int         # padded class_size (multiple of tn)
    Ep: int         # padded embed_size (multiple of tk)
    tn: int
    tk: int
    tm_cap: int
    align_m: int
    vmem_limit: int


def _plan(batch_hint, C, E, in_item, out_item):
    budget = _vmem_budget()
    align_m = 16 if in_item < 4 else 8          # bf16 packs 2 rows / sublane
    tm_cap = max(align_m, min(512, _round_up(batch_hint, align_m)))

    Ep128 = _round_up(E, 128)
    Cp128 = _round_up(C, 128)
    tn_cands = _tile_candidates(Cp128)
    tk_cands = _tile_candidates(Ep128)

    # 1) Prefer collapsing the reduction (tk == full E): no accumulator, no k loop,
    #    and each weight block is a long contiguous HBM slab.
    min_tn = min(512, Cp128)
    for tn in tn_cands:
        if tn < min_tn:
            break
        if _vmem_need(tm_cap, tn, Ep128, in_item, out_item, with_acc=False) <= budget:
            return _Plan(C, E, _round_up(C, tn), Ep128, tn, Ep128,
                         tm_cap, align_m, budget)

    # 2) Otherwise tile the reduction: prefer the largest (tk * tn) that fits.
    pairs = sorted(((tk, tn) for tk in tk_cands for tn in tn_cands),
                   key=lambda p: (p[0] * p[1], p[0]), reverse=True)
    for tk, tn in pairs:
        if _vmem_need(tm_cap, tn, tk, in_item, out_item, with_acc=True) <= budget:
            return _Plan(C, E, _round_up(C, tn), _round_up(E, tk), tn, tk,
                         tm_cap, align_m, budget)

    # 3) Safety net: minimum legal tiles (always fits the budget above).
    return _Plan(C, E, _round_up(C, 128), _round_up(E, 128), 128, 128,
                 tm_cap, align_m, budget)


# ---------------------------------------------------------------------------
# kernels
# ---------------------------------------------------------------------------
def _linear_kernel_single_k(x_ref, w_ref, b_ref, o_ref):
    """Full reduction in one step: o = x @ w + b   (w is pre-transposed (E, C))."""
    acc = jax.lax.dot_general(
        x_ref[...], w_ref[...],
        dimension_numbers=(((1,), (0,)), ((), ())),
        preferred_element_type=jnp.float32)
    o_ref[...] = (acc + b_ref[...]).astype(o_ref.dtype)


def _linear_kernel_multi_k(x_ref, w_ref, b_ref, o_ref, acc_ref):
    """Reduction tiled over grid axis 2; f32 VMEM accumulator seeded with the bias."""
    k = pl.program_id(2)

    @pl.when(k == 0)
    def _():
        acc_ref[...] = jnp.broadcast_to(b_ref[...], acc_ref.shape)

    acc_ref[...] += jax.lax.dot_general(
        x_ref[...], w_ref[...],
        dimension_numbers=(((1,), (0,)), ((), ())),
        preferred_element_type=jnp.float32)

    @pl.when(k == pl.num_programs(2) - 1)
    def _():
        o_ref[...] = acc_ref[...].astype(o_ref.dtype)


# ---------------------------------------------------------------------------
# parameter prep (one-time; NOT on the per-call hot path)
# ---------------------------------------------------------------------------
def prepare_classification_head_params(weight, bias, plan, *, compute_dtype=None):
    """weight: (C, E) torch nn.Linear layout.  Returns ((Ep, Cp) weight, (1, Cp) f32 bias)."""
    C, E = weight.shape
    w = weight.T                                        # one-time layout change
    w = _pad_to(_pad_to(w, 0, plan.Ep), 1, plan.Cp)
    if compute_dtype is not None:
        w = w.astype(compute_dtype)                     # e.g. bf16 weight streaming
    b = _pad_to(bias.reshape(1, C).astype(jnp.float32), 1, plan.Cp)
    return w, b


# ---------------------------------------------------------------------------
# forward
# ---------------------------------------------------------------------------
@functools.partial(jax.jit, static_argnames=("plan", "compute_dtype"))
def classification_head_forward(hidden_state, w_prepped, b_prepped, plan,
                                compute_dtype: Optional[type] = None):
    """logits = hidden_state @ weight.T + bias  (torch.nn.Linear semantics)."""
    B, E = hidden_state.shape
    assert E == plan.E, "embed_size mismatch with prepared parameters"
    Ep, Cp = w_prepped.shape
    out_dtype = hidden_state.dtype

    tm = max(plan.align_m, min(plan.tm_cap, _round_up(B, plan.align_m)))
    tn, tk = plan.tn, plan.tk

    x = hidden_state
    if compute_dtype is not None:
        x = x.astype(compute_dtype)
    x = _pad_to(_pad_to(x, 0, _round_up(B, tm)), 1, Ep)
    Bp = x.shape[0]

    # v7x megacore: guarantee >= 2 parallel output tiles (harmless on v5e/v6e).
    if (Bp // tm) * (Cp // tn) == 1 and tn % 256 == 0:
        tn //= 2

    grid_k = Ep // tk
    in_item = x.dtype.itemsize
    out_item = jnp.dtype(out_dtype).itemsize

    cost = pl.CostEstimate(
        flops=2 * Bp * Ep * Cp,
        transcendentals=0,
        bytes_accessed=(w_prepped.size * w_prepped.dtype.itemsize * (Bp // tm)
                        + x.size * in_item * (Cp // tn)
                        + b_prepped.size * 4
                        + Bp * Cp * out_item),
    )

    if grid_k == 1:
        out = pl.pallas_call(
            _linear_kernel_single_k,
            out_shape=jax.ShapeDtypeStruct((Bp, Cp), out_dtype),
            grid_spec=pltpu.PrefetchScalarGridSpec(
                num_scalar_prefetch=0,
                grid=(Bp // tm, Cp // tn),
                in_specs=[
                    pl.BlockSpec((tm, tk), lambda i, j: (i, 0)),   # activations
                    pl.BlockSpec((tk, tn), lambda i, j: (0, j)),   # weight (E, C)
                    pl.BlockSpec((1, tn), lambda i, j: (0, j)),    # bias
                ],
                out_specs=pl.BlockSpec((tm, tn), lambda i, j: (i, j)),
            ),
            compiler_params=pltpu.CompilerParams(
                dimension_semantics=("parallel", "parallel"),
                vmem_limit_bytes=plan.vmem_limit,
            ),
            cost_estimate=cost,
        )(x, w_prepped, b_prepped)
    else:
        out = pl.pallas_call(
            _linear_kernel_multi_k,
            out_shape=jax.ShapeDtypeStruct((Bp, Cp), out_dtype),
            grid_spec=pltpu.PrefetchScalarGridSpec(
                num_scalar_prefetch=0,
                grid=(Bp // tm, Cp // tn, grid_k),
                in_specs=[
                    pl.BlockSpec((tm, tk), lambda i, j, k: (i, k)),
                    pl.BlockSpec((tk, tn), lambda i, j, k: (k, j)),
                    pl.BlockSpec((1, tn), lambda i, j, k: (0, j)),
                ],
                out_specs=pl.BlockSpec((tm, tn), lambda i, j, k: (i, j)),
                scratch_shapes=[pltpu.VMEM((tm, tn), jnp.float32)],
            ),
            compiler_params=pltpu.CompilerParams(
                dimension_semantics=("parallel", "parallel", "arbitrary"),
                vmem_limit_bytes=plan.vmem_limit,
            ),
            cost_estimate=cost,
        )(x, w_prepped, b_prepped)

    return out[:B, :plan.C]


def make_classification_head(weight, bias, *, batch_hint=128, compute_dtype=None):
    """Build a forward fn with parameters prepared once (pad/cast/transpose hoisted)."""
    C, E = weight.shape
    in_item = jnp.dtype(compute_dtype).itemsize if compute_dtype is not None else \
        jnp.dtype(weight.dtype).itemsize
    plan = _plan(batch_hint, C, E, in_item, out_item=4)
    w_p, b_p = prepare_classification_head_params(weight, bias, plan,
                                                  compute_dtype=compute_dtype)

    def forward(hidden_state):
        lead = hidden_state.shape[:-1]
        x2 = hidden_state.reshape(-1, E)
        out = classification_head_forward(x2, w_p, b_p, plan, compute_dtype)
        return out.reshape(*lead, C)

    return forward


# ---------------------------------------------------------------------------
# demo / correctness check
# ---------------------------------------------------------------------------
if __name__ == "__main__":
    batch, embed_size, class_size = 8, 32, 16

    key = jax.random.PRNGKey(0)
    kx, kw, kb = jax.random.split(key, 3)

    hidden_state = jax.random.normal(kx, (batch, embed_size), dtype=jnp.float32)
    bound = 1.0 / (embed_size ** 0.5)        # mimics nn.Linear uniform init
    weight = jax.random.uniform(kw, (class_size, embed_size),
                                minval=-bound, maxval=bound, dtype=jnp.float32)
    bias = jax.random.uniform(kb, (class_size,),
                              minval=-bound, maxval=bound, dtype=jnp.float32)

    ref = hidden_state @ weight.T + bias

    # f32 path (exact-precision check)
    head_f32 = make_classification_head(weight, bias, batch_hint=batch)
    logits = head_f32(hidden_state)
    jax.block_until_ready(logits)
    assert logits.shape == (batch, class_size)
    assert jnp.allclose(logits, ref, atol=1e-5, rtol=1e-5)

    # bf16 weight/activation streaming path (f32 accumulation on the MXU)
    head_bf16 = make_classification_head(weight, bias, batch_hint=batch,
                                         compute_dtype=jnp.bfloat16)
    logits_bf16 = head_bf16(hidden_state)
    jax.block_until_ready(logits_bf16)
    assert logits_bf16.shape == (batch, class_size)
    assert jnp.allclose(logits_bf16, ref, atol=5e-2, rtol=5e-2)

    print("KERNEL_OK")
</pallas_src>

<mosaic_0001>
module attributes {stable_mosaic.version = 11 : i64} {
  func.func @_linear_kernel_single_k(%arg0: i32, %arg1: i32, %arg2: memref<8x128xf32, #tpu.memory_space<vmem>>, %arg3: memref<128x128xf32, #tpu.memory_space<vmem>>, %arg4: memref<1x128xf32, #tpu.memory_space<vmem>>, %arg5: memref<8x128xf32, #tpu.memory_space<vmem>>) attributes {dimension_semantics = [#tpu.dimension_semantics<parallel>, #tpu.dimension_semantics<parallel>], iteration_bounds = array<i64: 1, 1>, scalar_prefetch = 0 : i64, scratch_operands = 0 : i64, tpu.core_type = #tpu.core_type<tc>, window_params = [{transform_indices = @transform_0, window_bounds = array<i64: 8, 128>}, {transform_indices = @transform_1, window_bounds = array<i64: 128, 128>}, {transform_indices = @transform_2, window_bounds = array<i64: 1, 128>}, {transform_indices = @transform_3, window_bounds = array<i64: 8, 128>}]} {
    %c0 = arith.constant 0 : index
    %c0_0 = arith.constant 0 : index
    %0 = vector.load %arg2[%c0, %c0_0] : memref<8x128xf32, #tpu.memory_space<vmem>>, vector<8x128xf32>
    %c0_1 = arith.constant 0 : index
    %c0_2 = arith.constant 0 : index
    %1 = vector.load %arg3[%c0_1, %c0_2] : memref<128x128xf32, #tpu.memory_space<vmem>>, vector<128x128xf32>
    %cst = arith.constant dense<0.000000e+00> : vector<8x128xf32>
    %2 = tpu.matmul %0, %1, %cst {dimension_numbers = #tpu.dot_dimension_numbers<[1], [0], [0], [1], [0, 0, 1, 1], [], []>} : vector<8x128xf32>, vector<128x128xf32>, vector<8x128xf32> -> vector<8x128xf32>
    %c0_3 = arith.constant 0 : index
    %c0_4 = arith.constant 0 : index
    %3 = vector.load %arg4[%c0_3, %c0_4] : memref<1x128xf32, #tpu.memory_space<vmem>>, vector<1x128xf32>
    %4 = vector.broadcast %3 : vector<1x128xf32> to vector<8x128xf32>
    %5 = arith.addf %2, %4 : vector<8x128xf32>
    %c0_5 = arith.constant 0 : index
    %c0_6 = arith.constant 0 : index
    %6 = vector.load %arg5[%c0_5, %c0_6] : memref<8x128xf32, #tpu.memory_space<vmem>>, vector<8x128xf32>
    tpu.vector_store %arg5[%c0_5, %c0_6], %5 {strides = array<i32>} : memref<8x128xf32, #tpu.memory_space<vmem>>, vector<8x128xf32>,
    return
  }
  func.func @transform_0(%arg0: i32, %arg1: i32) -> (i32, i32) {
    %c0_i32 = arith.constant 0 : i32
    %c0_i32_0 = arith.constant 0 : i32
    return %arg0, %c0_i32 : i32, i32
  }
  func.func @transform_1(%arg0: i32, %arg1: i32) -> (i32, i32) {
    %c0_i32 = arith.constant 0 : i32
    %c0_i32_0 = arith.constant 0 : i32
    return %c0_i32, %arg1 : i32, i32
  }
  func.func @transform_2(%arg0: i32, %arg1: i32) -> (i32, i32) {
    %c0_i32 = arith.constant 0 : i32
    %c0_i32_0 = arith.constant 0 : i32
    return %c0_i32, %arg1 : i32, i32
  }
  func.func @transform_3(%arg0: i32, %arg1: i32) -> (i32, i32) {
    %c0_i32 = arith.constant 0 : i32
    return %arg0, %arg1 : i32, i32
  }
}

</mosaic_0001>

<llo_original>
// kernel: classification_head_forward.1
$region0: #{classification_head_forward.1}
  #allocation0 [shape = 'u32[]', space=smem, size = 0x4, offset = 0x4, fixed_abs, tag = 'smem constant byte address 0x4 - core index']
  #allocation1 [shape = 'u32[144,128]{1,0:T(1,128)}', space=vmem, size = 0x12000, scoped, tag = 'internal scratch']
  %s0 = inlined_call_operand.vmem [shape: f32[8,128], index: 0, kind: input, shape index: {}]
  %s1 = inlined_call_operand.hbm [shape: f32[128,128], index: 1, kind: input, shape index: {}]
  %s2 = inlined_call_operand.vmem [shape: f32[1,128], index: 2, kind: input, shape index: {}]
  %s3 = inlined_call_operand.hbm [shape: f32[8,128], index: 3, kind: output, shape index: {}]
  %s4 = sld [smem:[#allocation0]]
  $region26: #{classification_head_forward.1} parent=0
    _
  %s6 = ssub.s32 1, %s4
  %s7 = scalar_select 0, %s6, %s4
  $region1: #{classification_head_forward.1} parent=0
    #allocation2 [shape = 'u8[65536]{0}', space=vmem, size = 0x10000, scoped, tag = 'input window, operand 1, single buffered']
    #allocation3 [shape = 's32[1]{0}', space=sflag, size = 0x4, scoped, tag = 'scoped memory for classification_head_forward.1']
    #allocation4 [shape = 's32[1]{0}', space=sflag, size = 0x4, scoped, tag = 'scoped memory for classification_head_forward.1']
    #allocation5 [shape = 'u8[4096]{0}', space=vmem, size = 0x1000, scoped, tag = 'output window, operand 0, single buffered']
    %8 = vsyncpa [#allocation3], 0
    %9 = vsyncpa [#allocation4], 0
    // Predicated region
    $region2: #{classification_head_forward.1} parent=1 // pred_check
      _
    $region3: #{classification_head_forward.1} parent=1 // pred_check_branch
      %11 = sbr.rel (0) target = $region5
    $region4: #{classification_head_forward.1} parent=1 // pred_region
      _
    $region5: #{classification_head_forward.1} parent=1 // pred_fallthru
      _
    // Predicated region
    $region6: #{classification_head_forward.1} parent=1 // pred_check
      _
    $region7: #{classification_head_forward.1} parent=1 // pred_check_branch
      %13 = sbr.rel (0) target = $region9
    $region8: #{classification_head_forward.1} parent=1 // pred_region
      %s15 = ssub.s32 2048, 2048
      %16 = vsyncadd [#allocation3], %s15
      %s17 = sshll.u32 [#allocation2], 4
      %s18 = int_to_ptr.vmem [resolvable:$true] %s17
      %23 = dma.hbm_to_vmem [thread:$0]  %s1, 2048, %s18, [#allocation3], 128, 128, 8
    $region9: #{classification_head_forward.1} parent=1 // pred_fallthru
      _
    // Predicated region
    $region10: #{classification_head_forward.1} parent=1 // pred_check
      _
    $region11: #{classification_head_forward.1} parent=1 // pred_check_branch
      %25 = sbr.rel (0) target = $region13
    $region12: #{classification_head_forward.1} parent=1 // pred_region
      _
    $region13: #{classification_head_forward.1} parent=1 // pred_fallthru
      _
    // Predicated region
    $region14: #{classification_head_forward.1} parent=1 // pred_check
      _
    $region15: #{classification_head_forward.1} parent=1 // pred_check_branch
      %27 = sbr.rel (0) target = $region17
    $region16: #{classification_head_forward.1} parent=1 // pred_region
      %28 = dma.done [#allocation3], 2048
    $region17: #{classification_head_forward.1} parent=1 // pred_fallthru
      _
    %v29 = vld [vmem:[%s0] sm:$0xff]
    %v30 = vld [vmem:[#allocation2] sm:$0xff]
    %v31 = vld [vmem:[#allocation2 + $0x8] sm:$0xff]
    %v32 = vld [vmem:[#allocation2 + $0x10] sm:$0xff]
    %v33 = vld [vmem:[#allocation2 + $0x18] sm:$0xff]
    %v34 = vld [vmem:[#allocation2 + $0x20] sm:$0xff]
    %v35 = vld [vmem:[#allocation2 + $0x28] sm:$0xff]
    %v36 = vld [vmem:[#allocation2 + $0x30] sm:$0xff]
    %v37 = vld [vmem:[#allocation2 + $0x38] sm:$0xff]
    %v38 = vld [vmem:[#allocation2 + $0x40] sm:$0xff]
    %v39 = vld [vmem:[#allocation2 + $0x48] sm:$0xff]
    %v40 = vld [vmem:[#allocation2 + $0x50] sm:$0xff]
    %v41 = vld [vmem:[#allocation2 + $0x58] sm:$0xff]
    %v42 = vld [vmem:[#allocation2 + $0x60] sm:$0xff]
    %v43 = vld [vmem:[#allocation2 + $0x68] sm:$0xff]
    %v44 = vld [vmem:[#allocation2 + $0x70] sm:$0xff]
    %v45 = vld [vmem:[#allocation2 + $0x78] sm:$0xff]
    %v46 = vld [vmem:[%s2] sm:$0x1]
    %v48 = vlaneseq
    %v49 = vshrl.u32 %v48, 7
    %v50 = vsub.s32 0, %v49
    %v51 = vrot.slane %v46, %v50
    %53 = vmatprep.subr.mxu0 0.0
    %54 = vmatpush1.msra.mxu0 %v30
    %55 = vmatprep.subr.mxu0 0.0
    %56 = vmatpush1.msra.mxu0 %v31
    %57 = vmatprep.subr.mxu0 0.0
    %58 = vmatpush1.msra.mxu0 %v32
    %59 = vmatprep.subr.mxu0 0.0
    %60 = vmatpush1.msra.mxu0 %v33
    %61 = vmatprep.subr.mxu0 0.0
    %62 = vmatpush1.msra.mxu0 %v34
    %63 = vmatprep.subr.mxu0 0.0
    %64 = vmatpush1.msra.mxu0 %v35
    %65 = vmatprep.subr.mxu0 0.0
    %66 = vmatpush1.msra.mxu0 %v36
    %67 = vmatprep.subr.mxu0 0.0
    %68 = vmatpush1.msra.mxu0 %v37
    %69 = vmatprep.subr.mxu0 0.0
    %70 = vmatpush1.msra.mxu0 %v38
    %71 = vmatprep.subr.mxu0 0.0
    %72 = vmatpush1.msra.mxu0 %v39
    %73 = vmatprep.subr.mxu0 0.0
    %74 = vmatpush1.msra.mxu0 %v40
    %75 = vmatprep.subr.mxu0 0.0
    %76 = vmatpush1.msra.mxu0 %v41
    %77 = vmatprep.subr.mxu0 0.0
    %78 = vmatpush1.msra.mxu0 %v42
    %79 = vmatprep.subr.mxu0 0.0
    %80 = vmatpush1.msra.mxu0 %v43
    %81 = vmatprep.subr.mxu0 0.0
    %82 = vmatpush1.msra.mxu0 %v44
    %83 = vmatprep.subr.mxu0 0.0
    %84 = vmatpush1.msra.mxu0 %v45
    %85 = vmatprep.subr.mxu0 0.0
    %86 = vmatpush1.msra.mxu0 0.0
    %87 = vmatprep.subr.mxu0 0.0
    %88 = vmatpush1.msra.mxu0 0.0
    %89 = vmatprep.subr.mxu0 0.0
    %90 = vmatpush1.msra.mxu0 0.0
    %91 = vmatprep.subr.mxu0 0.0
    %92 = vmatpush1.msra.mxu0 0.0
    %93 = vmatprep.subr.mxu0 0.0
    %94 = vmatpush1.msra.mxu0 0.0
    %95 = vmatprep.subr.mxu0 0.0
    %96 = vmatpush1.msra.mxu0 0.0
    %97 = vmatprep.subr.mxu0 0.0
    %98 = vmatpush1.msra.mxu0 0.0
    %99 = vmatprep.subr.mxu0 0.0
    %100 = vmatpush1.msra.mxu0 0.0
    %101 = vmatprep.subr.mxu0 0.0
    %102 = vmatpush1.msra.mxu0 0.0
    %103 = vmatprep.subr.mxu0 0.0
    %104 = vmatpush1.msra.mxu0 0.0
    %105 = vmatprep.subr.mxu0 0.0
    %106 = vmatpush1.msra.mxu0 0.0
    %107 = vmatprep.subr.mxu0 0.0
    %108 = vmatpush1.msra.mxu0 0.0
    %109 = vmatprep.subr.mxu0 0.0
    %110 = vmatpush1.msra.mxu0 0.0
    %111 = vmatprep.subr.mxu0 0.0
    %112 = vmatpush1.msra.mxu0 0.0
    %113 = vmatprep.subr.mxu0 0.0
    %114 = vmatpush1.msra.mxu0 0.0
    %115 = vmatprep.subr.mxu0 0.0
    %116 = vmatpush1.msra.mxu0 0.0
    %117 = vmatprep.mubr.f32.mxu0 0.0
    %118 = vmatmul.mubr.f32.gmra.mrb[0].mxu0 %v29
    %v119 = vpop.f32.mrb[0].mxu0
    %v120 = vadd.f32 %v51, %v119
    %v121 = vpop.f32.mrb[0].mxu0
    %122 = vdwg.mxu0
    %123 = vst [vmem:[#allocation5] sm:$0xff] %v120
    // Predicated region
    $region18: #{classification_head_forward.1} parent=1 // pred_check
      _
    $region19: #{classification_head_forward.1} parent=1 // pred_check_branch
      %125 = sbr.rel (0) target = $region21
    $region20: #{classification_head_forward.1} parent=1 // pred_region
      %s127 = ssub.s32 128, 128
      %128 = vsyncadd [#allocation4], %s127
      %s130 = sshll.u32 [#allocation5], 4
      %s131 = int_to_ptr.vmem [resolvable:$true] %s130
      %133 = dma.vmem_to_hbm [thread:$0]  %s131, 128, %s3, [#allocation4]
    $region21: #{classification_head_forward.1} parent=1 // pred_fallthru
      _
    // Predicated region
    $region22: #{classification_head_forward.1} parent=1 // pred_check
      _
    $region23: #{classification_head_forward.1} parent=1 // pred_check_branch
      %135 = sbr.rel (0) target = $region25
    $region24: #{classification_head_forward.1} parent=1 // pred_region
      %136 = dma.done [#allocation4], 128
    $region25: #{classification_head_forward.1} parent=1 // pred_fallthru
      _
    %137 = vsyncpa [#allocation3], 1
    %138 = vsyncpa [#allocation4], 1

</llo_original>
